<compile_context>
chip_gen: v7x
topology: tpu7x:2x2x1
jax: 0.10.0
libtpu: 0.0.40
codegen_flags: <defaults>
</compile_context>

<pallas_src>
import math
import numpy as np
import jax
import jax.numpy as jnp
from jax.experimental import pallas as pl
from jax.experimental.pallas import tpu as pltpu


def _listify(x, n=None):
    out = list(x) if isinstance(x, (list, tuple)) else [x]
    if n is not None and len(out) == 1:
        out = out * n
    return out


def _level_anchors(input_size, fts_size, anchor_sizes, aspect_ratios, stride):
    """Replicates torch `_generate_anchors` for one pyramid level.

    Returns the un-clipped anchors, shape (G^2 * K, 4) float32, i.e. the
    already-fused `shifts + base_anchors` broadcast-add done on the host.
    """
    scales = np.asarray(anchor_sizes, dtype=np.float32)
    ar = np.asarray(aspect_ratios, dtype=np.float32)
    h_ratios = np.sqrt(ar)
    w_ratios = 1.0 / h_ratios
    ws = (w_ratios[:, None] * scales[None, :]).reshape(-1)
    hs = (h_ratios[:, None] * scales[None, :]).reshape(-1)
    # torch: stack([-ws,-hs,ws,hs],1).div(2).round()  (round-half-to-even == np.round)
    base = np.round(np.stack([-ws, -hs, ws, hs], axis=1) / 2.0).astype(np.float32)  # (K, 4)

    grid_size = fts_size / stride
    strides_val = np.float32(input_size / grid_size)
    n_pts = int(math.ceil(grid_size + 1.0))  # == len(torch.arange(grid_size + 1))
    shifts_1d = np.arange(n_pts, dtype=np.float32) * strides_val
    sy, sx = np.meshgrid(shifts_1d, shifts_1d, indexing="ij")  # torch.meshgrid default 'ij'
    sy = sy.reshape(-1)
    sx = sx.reshape(-1)
    shifts = np.stack([sx, sy, sx, sy], axis=1).astype(np.float32)  # (G^2, 4)

    # shifts.view(-1,1,4) + base.view(1,-1,4) -> reshape(-1,4), fused on host.
    anchors = (shifts[:, None, :] + base[None, :, :]).reshape(-1, 4)
    return anchors.astype(np.float32)


def _make_anchor_kernel(input_size):
    img = float(input_size)

    def kernel(anc_ref, out_ref):
        # anc_ref: (8, block_n) f32; sublanes 0..3 = x1,y1,x2,y2 (unclipped),
        # sublanes 4..7 and any padded lane columns are zero.
        a = anc_ref[...]
        # box_ops.clip_boxes_to_image(anchors, (input_size, input_size))
        # NOTE: x and y share the bound because the image is square.
        boxes = jnp.clip(a, 0.0, img)
        # box_ops.remove_small_boxes(anchors, 0.001) keep-mask (all f32, no bf16).
        w = boxes[2:3, :] - boxes[0:1, :]
        h = boxes[3:4, :] - boxes[1:2, :]
        keep = jnp.logical_and(w >= 1e-3, h >= 1e-3).astype(jnp.float32)  # (1, block_n)
        # Pack the keep mask into sublane 4 so the kernel does a single
        # full-slab unmasked store (padded columns stay 0 -> keep=0).
        row = jax.lax.broadcasted_iota(jnp.int32, boxes.shape, 0)
        out_ref[...] = jnp.where(row == 4, jnp.broadcast_to(keep, boxes.shape), boxes)

    return kernel


def _anchors_pallas(anchors_unclipped, input_size, block_n=32768):
    """Runs clip + keep-mask on TPU; returns the (8, N_pad) slab and true N."""
    n = anchors_unclipped.shape[0]
    n_pad = max(128, ((n + 127) // 128) * 128)  # lane axis padded to 128
    if n_pad <= block_n:
        block_n = n_pad                          # single block, no grid splitting
    else:
        n_pad = ((n_pad + block_n - 1) // block_n) * block_n  # even block division

    slab = np.zeros((8, n_pad), dtype=np.float32)
    slab[:4, :n] = anchors_unclipped.T           # coordinate rows, lane-dense

    out = pl.pallas_call(
        _make_anchor_kernel(input_size),
        out_shape=jax.ShapeDtypeStruct((8, n_pad), jnp.float32),
        grid=(n_pad // block_n,),
        in_specs=[pl.BlockSpec((8, block_n), lambda i: (0, i))],
        out_specs=pl.BlockSpec((8, block_n), lambda i: (0, i)),
        compiler_params=pltpu.CompilerParams(dimension_semantics=("parallel",)),
    )(jnp.asarray(slab))
    return out, n


class SimpleAnchorGenerator:
    """JAX/Pallas port of rpsalweaklydet.models.anchor_generator.SimpleAnchorGenerator."""

    def __init__(self, input_size, anchor_sizes=(64, 128, 256),
                 aspect_ratios=(1.0,), strides=(8, 16, 32)):
        anchor_sizes = _listify(anchor_sizes)
        aspect_ratios = _listify(aspect_ratios)
        strides = _listify(strides, len(anchor_sizes))
        self.input_size = input_size
        self.anchor_sizes = anchor_sizes
        self.aspect_ratios = aspect_ratios
        self.strides = strides
        # NOTE: like the PyTorch module, anchors are cached on first call and
        # never invalidated, even if a later x has a different spatial width.
        self.anchors = None

    def generate_anchors(self, x):
        fts_size = x.shape[-1]
        anchors_unclipped = np.concatenate(
            [_level_anchors(self.input_size, fts_size, _listify(a),
                            self.aspect_ratios, s)
             for a, s in zip(self.anchor_sizes, self.strides)], axis=0)

        slab, n = _anchors_pallas(anchors_unclipped, self.input_size)

        # TODO(synk): `anchors[keep]` is a dynamic-shape boolean gather; done
        # host-side (the PyTorch forward returns a Python list, so this path is
        # already outside jit).  Exactly one device->host pull / one sync.
        slab_np = np.asarray(jax.block_until_ready(slab))
        boxes = slab_np[:4, :n].T                 # (n, 4) [x1, y1, x2, y2]
        keep = slab_np[4, :n] > 0.5
        self.anchors = jnp.asarray(boxes[keep])

    def __call__(self, x):
        if self.anchors is None:
            self.generate_anchors(x)
        # JAX arrays are immutable: reuse the same device buffer per batch
        # element instead of re-uploading B copies (matches .clone() semantics).
        return [self.anchors] * x.shape[0]


def _reference_anchors(input_size, fts_size, anchor_sizes, aspect_ratios, strides):
    """Pure-numpy reference replicating the PyTorch semantics."""
    rows = [_level_anchors(input_size, fts_size, _listify(a), aspect_ratios, s)
            for a, s in zip(anchor_sizes, strides)]
    anchors = np.concatenate(rows, axis=0)
    anchors = np.clip(anchors, 0.0, float(input_size))
    keep = ((anchors[:, 2] - anchors[:, 0]) >= 1e-3) & \
           ((anchors[:, 3] - anchors[:, 1]) >= 1e-3)
    return anchors[keep]


if __name__ == "__main__":
    key = jax.random.PRNGKey(0)
    x = jax.random.normal(key, (2, 4, 16, 16), dtype=jnp.float32)  # NCHW, like PyTorch

    gen = SimpleAnchorGenerator(input_size=64)  # default anchor_sizes/ratios/strides
    outs = gen(x)
    outs = [jax.block_until_ready(o) for o in outs]

    ref = _reference_anchors(gen.input_size, x.shape[-1], gen.anchor_sizes,
                             gen.aspect_ratios, gen.strides)
    assert len(outs) == x.shape[0]
    for o in outs:
        assert o.shape == ref.shape, (o.shape, ref.shape)
        np.testing.assert_allclose(np.asarray(o), ref, rtol=0, atol=1e-5)

    print("KERNEL_OK")
</pallas_src>

<mosaic_0001>
module attributes {stable_mosaic.version = 11 : i64} {
  func.func @kernel(%arg0: i32, %arg1: memref<8x128xf32, #tpu.memory_space<vmem>>, %arg2: memref<8x128xf32, #tpu.memory_space<vmem>>) attributes {dimension_semantics = [#tpu.dimension_semantics<parallel>], iteration_bounds = array<i64: 1>, scalar_prefetch = 0 : i64, scratch_operands = 0 : i64, tpu.core_type = #tpu.core_type<tc>, window_params = [{transform_indices = @transform_0, window_bounds = array<i64: 8, 128>}, {transform_indices = @transform_1, window_bounds = array<i64: 8, 128>}]} {
    %c0 = arith.constant 0 : index
    %c0_0 = arith.constant 0 : index
    %0 = vector.load %arg1[%c0, %c0_0] : memref<8x128xf32, #tpu.memory_space<vmem>>, vector<8x128xf32>
    %cst = arith.constant 0.000000e+00 : f32
    %cst_1 = arith.constant 6.400000e+01 : f32
    %1 = vector.broadcast %cst : f32 to vector<8x128xf32>
    %2 = arith.maximumf %1, %0 : vector<8x128xf32>
    %3 = vector.broadcast %cst_1 : f32 to vector<8x128xf32>
    %4 = arith.minimumf %3, %2 : vector<8x128xf32>
    %5 = vector.extract_strided_slice %4 {offsets = [2, 0], sizes = [1, 128], strides = [1, 1]} : vector<8x128xf32> to vector<1x128xf32>
    %6 = vector.extract_strided_slice %4 {offsets = [0, 0], sizes = [1, 128], strides = [1, 1]} : vector<8x128xf32> to vector<1x128xf32>
    %7 = arith.subf %5, %6 : vector<1x128xf32>
    %8 = vector.extract_strided_slice %4 {offsets = [3, 0], sizes = [1, 128], strides = [1, 1]} : vector<8x128xf32> to vector<1x128xf32>
    %9 = vector.extract_strided_slice %4 {offsets = [1, 0], sizes = [1, 128], strides = [1, 1]} : vector<8x128xf32> to vector<1x128xf32>
    %10 = arith.subf %8, %9 : vector<1x128xf32>
    %cst_2 = arith.constant 1.000000e-03 : f32
    %11 = vector.broadcast %cst_2 : f32 to vector<1x128xf32>
    %12 = arith.cmpf oge, %7, %11 : vector<1x128xf32>
    %cst_3 = arith.constant 1.000000e-03 : f32
    %13 = vector.broadcast %cst_3 : f32 to vector<1x128xf32>
    %14 = arith.cmpf oge, %10, %13 : vector<1x128xf32>
    %15 = arith.andi %12, %14 : vector<1x128xi1>
    %16 = arith.extui %15 : vector<1x128xi1> to vector<1x128xi32>
    %17 = arith.sitofp %16 : vector<1x128xi32> to vector<1x128xf32>
    %18 = tpu.iota {dimensions = array<i32: 0>} : vector<8x128xi32>
    %c4_i32 = arith.constant 4 : i32
    %19 = vector.broadcast %c4_i32 : i32 to vector<8x128xi32>
    %20 = arith.cmpi eq, %18, %19 : vector<8x128xi32>
    %21 = vector.shape_cast %17 : vector<1x128xf32> to vector<1x128xf32>
    %22 = vector.broadcast %21 : vector<1x128xf32> to vector<8x128xf32>
    %23 = arith.select %20, %22, %4 : vector<8x128xi1>, vector<8x128xf32>
    %c0_4 = arith.constant 0 : index
    %c0_5 = arith.constant 0 : index
    %24 = vector.load %arg2[%c0_4, %c0_5] : memref<8x128xf32, #tpu.memory_space<vmem>>, vector<8x128xf32>
    tpu.vector_store %arg2[%c0_4, %c0_5], %23 {strides = array<i32>} : memref<8x128xf32, #tpu.memory_space<vmem>>, vector<8x128xf32>,
    return
  }
  func.func @transform_0(%arg0: i32) -> (i32, i32) {
    %c0_i32 = arith.constant 0 : i32
    %c0_i32_0 = arith.constant 0 : i32
    return %c0_i32, %arg0 : i32, i32
  }
  func.func @transform_1(%arg0: i32) -> (i32, i32) {
    %c0_i32 = arith.constant 0 : i32
    %c0_i32_0 = arith.constant 0 : i32
    return %c0_i32, %arg0 : i32, i32
  }
}

</mosaic_0001>

<llo_original>
// kernel: tpu_custom_call.1
$region0: #{tpu_custom_call.1}
  #allocation0 [shape = 'u32[]', space=smem, size = 0x4, offset = 0x4, fixed_abs, tag = 'smem constant byte address 0x4 - core index']
  #allocation1 [shape = 'u32[144,128]{1,0:T(1,128)}', space=vmem, size = 0x12000, scoped, tag = 'internal scratch']
  %s0 = inlined_call_operand.hbm [shape: f32[8,128], index: 0, kind: input, shape index: {}]
  %s1 = inlined_call_operand.hbm [shape: f32[8,128], index: 1, kind: output, shape index: {}]
  %s2 = sld [smem:[#allocation0]]
  $region18: #{tpu_custom_call.1} parent=0
    _
  %s4 = ssub.s32 1, %s2
  %s5 = scalar_select 0, %s4, %s2
  $region1: #{tpu_custom_call.1} parent=0
    #allocation2 [shape = 'u8[4096]{0}', space=vmem, size = 0x1000, scoped, tag = 'input window, operand 0, single buffered']
    #allocation3 [shape = 's32[1]{0}', space=sflag, size = 0x4, scoped, tag = 'scoped memory for tpu_custom_call.1']
    #allocation4 [shape = 's32[1]{0}', space=sflag, size = 0x4, scoped, tag = 'scoped memory for tpu_custom_call.1']
    #allocation5 [shape = 'u8[4096]{0}', space=vmem, size = 0x1000, scoped, tag = 'output window, operand 0, single buffered']
    %6 = vsyncpa [#allocation3], 0
    %7 = vsyncpa [#allocation4], 0
    // Predicated region
    $region2: #{tpu_custom_call.1} parent=1 // pred_check
      _
    $region3: #{tpu_custom_call.1} parent=1 // pred_check_branch
      %9 = sbr.rel (0) target = $region5
    $region4: #{tpu_custom_call.1} parent=1 // pred_region
      %s11 = ssub.s32 128, 128
      %12 = vsyncadd [#allocation3], %s11
      %s14 = sshll.u32 [#allocation2], 4
      %s15 = int_to_ptr.vmem [resolvable:$true] %s14
      %17 = dma.hbm_to_vmem [thread:$0]  %s0, 128, %s15, [#allocation3]
    $region5: #{tpu_custom_call.1} parent=1 // pred_fallthru
      _
    // Predicated region
    $region6: #{tpu_custom_call.1} parent=1 // pred_check
      _
    $region7: #{tpu_custom_call.1} parent=1 // pred_check_branch
      %19 = sbr.rel (0) target = $region9
    $region8: #{tpu_custom_call.1} parent=1 // pred_region
      %20 = dma.done [#allocation3], 128
    $region9: #{tpu_custom_call.1} parent=1 // pred_fallthru
      _
    %v21 = vld [vmem:[#allocation2] sm:$0xff]
    %v22 = vmax.f32 %v21, 0.0
    %v23 = vmin.f32 %v22, 64.0
    %v25 = vrot.slane %v23, 6
    %v27 = vsub.f32 %v23, %v25
    %vm28 = vcmp.ge.f32.partialorder %v27, 0.001
    %v29 = vsel %vm28, 1, 0
    %v30 = vrot.slane %v29, 1
    %vm31 = vcmp.ne.s32.totalorder %v30, 0
    %vm32 = vmand %vm28, %vm31
    %v33 = vsel %vm32, 1, 0
    %v34 = vcvt.s32.f32 %v33
    %v35 = vlaneseq
    %v36 = vshrl.u32 %v35, 7
    %vm37 = vcmp.eq.s32.totalorder %v36, 4
    %v38 = vlaneseq
    %v39 = vshrl.u32 %v38, 7
    %v40 = vsub.s32 2, %v39
    %v41 = vrot.slane %v34, %v40
    %v42 = vsel %vm37, %v41, %v23
    %43 = vst [vmem:[#allocation5] sm:$0xff] %v42
    // Predicated region
    $region10: #{tpu_custom_call.1} parent=1 // pred_check
      _
    $region11: #{tpu_custom_call.1} parent=1 // pred_check_branch
      %45 = sbr.rel (0) target = $region13
    $region12: #{tpu_custom_call.1} parent=1 // pred_region
      %s47 = ssub.s32 128, 128
      %48 = vsyncadd [#allocation4], %s47
      %s50 = sshll.u32 [#allocation5], 4
      %s51 = int_to_ptr.vmem [resolvable:$true] %s50
      %53 = dma.vmem_to_hbm [thread:$0]  %s51, 128, %s1, [#allocation4]
    $region13: #{tpu_custom_call.1} parent=1 // pred_fallthru
      _
    // Predicated region
    $region14: #{tpu_custom_call.1} parent=1 // pred_check
      _
    $region15: #{tpu_custom_call.1} parent=1 // pred_check_branch
      %55 = sbr.rel (0) target = $region17
    $region16: #{tpu_custom_call.1} parent=1 // pred_region
      %56 = dma.done [#allocation4], 128
    $region17: #{tpu_custom_call.1} parent=1 // pred_fallthru
      _
    %57 = vsyncpa [#allocation3], 1
    %58 = vsyncpa [#allocation4], 1

</llo_original>
